<compile_context>
chip_gen: v7x
topology: tpu7x:2x2x1
jax: 0.10.0
libtpu: 0.0.40
codegen_flags: <defaults>
</compile_context>

<pallas_src>
import functools

import jax
import jax.numpy as jnp
from jax.experimental import pallas as pl
from jax.experimental.pallas import tpu as pltpu

DIM = 32            # args.dim default
HID = 10
_CHUNK_ROWS = 2048  # in-kernel compute sub-chunk (bounds vreg live ranges)


def _round_up(n: int, m: int) -> int:
    return ((n + m - 1) // m) * m


def mlp_discriminator_kernel(x_ref, w1_ref, b1_ref, w2_ref, b2_ref,
                             w3_ref, b3_ref, o_ref, *, chunk, n_chunks):
    # x tile: (tile_b, DIM) f32.  Weights (PyTorch (out, in) layout):
    #   w1 (10, DIM), w2 (10, 10), w3 stored (10, 1); biases b1/b2 (10, 1),
    #   b3 (1, 1).  All intermediates keep batch on the lane axis.
    w1 = w1_ref[...]
    b1 = b1_ref[...]
    w2 = w2_ref[...]
    b2 = b2_ref[...]
    w3 = w3_ref[...]
    b3 = b3_ref[...]

    def body(c, carry):
        start = pl.multiple_of(c * chunk, 128)
        x = x_ref[pl.ds(start, chunk), :]                      # (chunk, DIM)

        # layer1 + ReLU: (10, DIM) . (chunk, DIM)^T -> (10, chunk) on the MXU
        # (transpose folded into the contraction).
        h1 = jax.lax.dot_general(
            w1, x,
            dimension_numbers=(((1,), (1,)), ((), ())),
            preferred_element_type=jnp.float32,
        ) + b1
        h1 = jnp.maximum(h1, 0.0)

        # layer2 + ReLU: (10, 10) . (10, chunk) -> (10, chunk) on the MXU.
        h2 = jnp.dot(w2, h1, preferred_element_type=jnp.float32) + b2
        h2 = jnp.maximum(h2, 0.0)

        # layer3 (10 -> 1) on VPU/XLU: broadcast-mul + sublane reduce.
        logits = jnp.sum(h2 * w3, axis=0, keepdims=True) + b3  # (1, chunk)

        # Numerically stable sigmoid via tanh (EUP slot); unmasked lane-dense
        # store into the (1, tile_b) output slab.
        o_ref[:, pl.ds(start, chunk)] = 0.5 + 0.5 * jnp.tanh(0.5 * logits)
        return carry

    jax.lax.fori_loop(0, n_chunks, body, 0, unroll=True)


@functools.partial(jax.jit, static_argnames=("tile_b",))
def mlp_discriminator(x, params, tile_b: int = 8192):
    """x: (B, DIM) float32 -> (B, 1) float32 in (0, 1)."""
    w1, b1, w2, b2, w3, b3 = params
    B, D = x.shape

    # ---- tile / chunk selection (all Python ints, static under jit) -------
    B_aligned = _round_up(B, 128)
    if B_aligned <= _CHUNK_ROWS:
        tile_b = B_aligned          # single small tile = single chunk
        chunk = tile_b
    else:
        tile_b = min(_round_up(max(tile_b, _CHUNK_ROWS), _CHUNK_ROWS),
                     _round_up(B_aligned, _CHUNK_ROWS))
        chunk = _CHUNK_ROWS
    n_chunks = tile_b // chunk

    grid = (pl.cdiv(B, tile_b),)
    B_pad = grid[0] * tile_b        # only the tiny output is padded; x is NOT

    kernel = functools.partial(mlp_discriminator_kernel,
                               chunk=chunk, n_chunks=n_chunks)

    def const_spec(arr):
        # Full-extent block + constant index_map: fetched once, stays resident
        # in VMEM across all grid steps.
        return pl.BlockSpec(arr.shape, lambda i: (0, 0))

    flops = 2 * B_pad * (D * HID + HID * HID + HID)
    bytes_accessed = (B_pad * (D * 4 + 4)
                      + sum(int(a.size) * 4 for a in (w1, b1, w2, b2, w3, b3)))
    cost = pl.CostEstimate(flops=flops, transcendentals=B_pad,
                           bytes_accessed=bytes_accessed)

    out = pl.pallas_call(
        kernel,
        out_shape=jax.ShapeDtypeStruct((1, B_pad), jnp.float32),
        grid_spec=pltpu.PrefetchScalarGridSpec(
            num_scalar_prefetch=0,
            grid=grid,
            in_specs=[
                # x streamed; last (partial) block may read past B — those
                # rows are garbage, stay column-local, and are sliced off.
                pl.BlockSpec((tile_b, D), lambda i: (i, 0)),
                const_spec(w1), const_spec(b1),
                const_spec(w2), const_spec(b2),
                const_spec(w3), const_spec(b3),
            ],
            out_specs=pl.BlockSpec((1, tile_b), lambda i: (0, i)),
        ),
        compiler_params=pltpu.CompilerParams(
            # On v7x, verify via xprof that "parallel" shards the batch axis
            # across both TensorCores; fall back to CORE_PARALLEL if not.
            dimension_semantics=("parallel",),
            vmem_limit_bytes=32 * 1024 * 1024,
        ),
        cost_estimate=cost,
    )(x, w1, b1, w2, b2, w3, b3)

    out = out.reshape(B_pad, 1)
    if B_pad != B:
        out = out[:B]
    return out


def init_params(key, dim):
    """PyTorch nn.Linear-style U(-1/sqrt(fan_in), 1/sqrt(fan_in)) init.

    Weights kept in PyTorch (out_features, in_features) layout; biases stored
    as (out_features, 1) columns for lane broadcast; w3 stored transposed as
    (10, 1) for the in-kernel VPU broadcast-reduce.
    """
    def linear_init(k, fan_in, fan_out):
        kw, kb = jax.random.split(k)
        bound = 1.0 / jnp.sqrt(jnp.float32(fan_in))
        w = jax.random.uniform(kw, (fan_out, fan_in), jnp.float32, -bound, bound)
        b = jax.random.uniform(kb, (fan_out, 1), jnp.float32, -bound, bound)
        return w, b

    k1, k2, k3 = jax.random.split(key, 3)
    w1, b1 = linear_init(k1, dim, HID)      # (10, dim), (10, 1)
    w2, b2 = linear_init(k2, HID, HID)      # (10, 10),  (10, 1)
    w3, b3 = linear_init(k3, HID, 1)        # (1, 10),   (1, 1)
    return (w1, b1, w2, b2, w3.T, b3)       # w3 stored as (10, 1)


def reference_forward(x, params):
    """Pure-JAX reference (PyTorch semantics: x @ W.T + b per layer)."""
    w1, b1, w2, b2, w3, b3 = params
    h1 = jnp.maximum(x @ w1.T + b1[:, 0], 0.0)
    h2 = jnp.maximum(h1 @ w2.T + b2[:, 0], 0.0)
    return jax.nn.sigmoid(h2 @ w3 + b3[0])


if __name__ == "__main__":
    key = jax.random.PRNGKey(0)
    k1, k2, k3, kp = jax.random.split(key, 4)
    params = init_params(kp, DIM)

    # Small batch: single tile, single chunk.
    x_small = jax.random.normal(k1, (8, DIM), jnp.float32)
    out_small = jax.block_until_ready(mlp_discriminator(x_small, params))
    ref_small = reference_forward(x_small, params)
    assert out_small.shape == (8, 1)
    assert jnp.allclose(out_small, ref_small, atol=1e-5, rtol=1e-5), \
        "mismatch vs reference (small batch)"

    # B not a tile multiple: exercises the partial-last-block path with NO
    # wrapper-side padding of x.
    x_mid = jax.random.normal(k2, (1500, DIM), jnp.float32)
    out_mid = jax.block_until_ready(mlp_discriminator(x_mid, params))
    ref_mid = reference_forward(x_mid, params)
    assert out_mid.shape == (1500, 1)
    assert jnp.allclose(out_mid, ref_mid, atol=1e-5, rtol=1e-5), \
        "mismatch vs reference (partial block)"

    # Multiple pipelined grid steps + multi-chunk inner loop + partial block.
    x_big = jax.random.normal(k3, (5000, DIM), jnp.float32)
    out_big = jax.block_until_ready(mlp_discriminator(x_big, params, tile_b=4096))
    ref_big = reference_forward(x_big, params)
    assert out_big.shape == (5000, 1)
    assert jnp.allclose(out_big, ref_big, atol=1e-5, rtol=1e-5), \
        "mismatch vs reference (large batch)"

    print("KERNEL_OK")
</pallas_src>

<mosaic_0001>
module attributes {stable_mosaic.version = 11 : i64} {
  func.func @mlp_discriminator_kernel(%arg0: i32, %arg1: memref<128x32xf32, #tpu.memory_space<vmem>>, %arg2: memref<10x32xf32, #tpu.memory_space<vmem>>, %arg3: memref<10x1xf32, #tpu.memory_space<vmem>>, %arg4: memref<10x10xf32, #tpu.memory_space<vmem>>, %arg5: memref<10x1xf32, #tpu.memory_space<vmem>>, %arg6: memref<10x1xf32, #tpu.memory_space<vmem>>, %arg7: memref<1x1xf32, #tpu.memory_space<vmem>>, %arg8: memref<1x128xf32, #tpu.memory_space<vmem>>) attributes {dimension_semantics = [#tpu.dimension_semantics<parallel>], iteration_bounds = array<i64: 1>, scalar_prefetch = 0 : i64, scratch_operands = 0 : i64, tpu.core_type = #tpu.core_type<tc>, window_params = [{transform_indices = @transform_0, window_bounds = array<i64: 128, 32>}, {pipeline_mode = #tpu.pipeline_mode<synchronous>, transform_indices = @transform_1, window_bounds = array<i64: 10, 32>}, {pipeline_mode = #tpu.pipeline_mode<synchronous>, transform_indices = @transform_2, window_bounds = array<i64: 10, 1>}, {pipeline_mode = #tpu.pipeline_mode<synchronous>, transform_indices = @transform_3, window_bounds = array<i64: 10, 10>}, {pipeline_mode = #tpu.pipeline_mode<synchronous>, transform_indices = @transform_4, window_bounds = array<i64: 10, 1>}, {pipeline_mode = #tpu.pipeline_mode<synchronous>, transform_indices = @transform_5, window_bounds = array<i64: 10, 1>}, {pipeline_mode = #tpu.pipeline_mode<synchronous>, transform_indices = @transform_6, window_bounds = array<i64: 1, 1>}, {transform_indices = @transform_7, window_bounds = array<i64: 1, 128>}]} {
    %c0 = arith.constant 0 : index
    %c0_0 = arith.constant 0 : index
    %0 = vector.load %arg2[%c0, %c0_0] : memref<10x32xf32, #tpu.memory_space<vmem>>, vector<10x32xf32>
    %c0_1 = arith.constant 0 : index
    %c0_2 = arith.constant 0 : index
    %1 = vector.load %arg3[%c0_1, %c0_2] : memref<10x1xf32, #tpu.memory_space<vmem>>, vector<10x1xf32>
    %c0_3 = arith.constant 0 : index
    %c0_4 = arith.constant 0 : index
    %2 = vector.load %arg4[%c0_3, %c0_4] : memref<10x10xf32, #tpu.memory_space<vmem>>, vector<10x10xf32>
    %c0_5 = arith.constant 0 : index
    %c0_6 = arith.constant 0 : index
    %3 = vector.load %arg5[%c0_5, %c0_6] : memref<10x1xf32, #tpu.memory_space<vmem>>, vector<10x1xf32>
    %c0_7 = arith.constant 0 : index
    %c0_8 = arith.constant 0 : index
    %4 = vector.load %arg6[%c0_7, %c0_8] : memref<10x1xf32, #tpu.memory_space<vmem>>, vector<10x1xf32>
    %c0_9 = arith.constant 0 : index
    %c0_10 = arith.constant 0 : index
    %5 = vector.load %arg7[%c0_9, %c0_10] : memref<1x1xf32, #tpu.memory_space<vmem>>, vector<1x1xf32>
    %c0_i32 = arith.constant 0 : i32
    %c128_i32 = arith.constant 128 : i32
    %6 = arith.muli %c0_i32, %c128_i32 : i32
    %7 = tpu.assume_multiple %6, 128 : i32
    %8 = arith.index_cast %7 : i32 to index
    %c0_11 = arith.constant 0 : index
    %9 = vector.load %arg1[%8, %c0_11] : memref<128x32xf32, #tpu.memory_space<vmem>>, vector<128x32xf32>
    %cst = arith.constant dense<0.000000e+00> : vector<10x128xf32>
    %10 = tpu.matmul %0, %9, %cst {dimension_numbers = #tpu.dot_dimension_numbers<[1], [1], [0], [0], [0, 0, 1, 0], [], []>} : vector<10x32xf32>, vector<128x32xf32>, vector<10x128xf32> -> vector<10x128xf32>
    %11 = vector.broadcast %1 : vector<10x1xf32> to vector<10x128xf32>
    %12 = arith.addf %10, %11 : vector<10x128xf32>
    %cst_12 = arith.constant 0.000000e+00 : f32
    %13 = vector.broadcast %cst_12 : f32 to vector<10x128xf32>
    %14 = arith.maximumf %12, %13 : vector<10x128xf32>
    %cst_13 = arith.constant dense<0.000000e+00> : vector<10x128xf32>
    %15 = tpu.matmul %2, %14, %cst_13 {dimension_numbers = #tpu.dot_dimension_numbers<[1], [0], [0], [1], [0, 0, 1, 1], [], []>} : vector<10x10xf32>, vector<10x128xf32>, vector<10x128xf32> -> vector<10x128xf32>
    %16 = vector.broadcast %3 : vector<10x1xf32> to vector<10x128xf32>
    %17 = arith.addf %15, %16 : vector<10x128xf32>
    %cst_14 = arith.constant 0.000000e+00 : f32
    %18 = vector.broadcast %cst_14 : f32 to vector<10x128xf32>
    %19 = arith.maximumf %17, %18 : vector<10x128xf32>
    %20 = vector.broadcast %4 : vector<10x1xf32> to vector<10x128xf32>
    %21 = arith.mulf %19, %20 : vector<10x128xf32>
    %cst_15 = arith.constant dense<0.000000e+00> : vector<128xf32>
    %22 = vector.multi_reduction <add>, %21, %cst_15 [0] : vector<10x128xf32> to vector<128xf32>
    %23 = vector.shape_cast %22 : vector<128xf32> to vector<1x128xf32>
    %24 = vector.broadcast %5 : vector<1x1xf32> to vector<1x128xf32>
    %25 = arith.addf %23, %24 : vector<1x128xf32>
    %cst_16 = arith.constant 5.000000e-01 : f32
    %26 = vector.broadcast %cst_16 : f32 to vector<1x128xf32>
    %27 = arith.mulf %26, %25 : vector<1x128xf32>
    %28 = math.tanh %27 : vector<1x128xf32>
    %cst_17 = arith.constant 5.000000e-01 : f32
    %29 = vector.broadcast %cst_17 : f32 to vector<1x128xf32>
    %30 = arith.mulf %29, %28 : vector<1x128xf32>
    %cst_18 = arith.constant 5.000000e-01 : f32
    %31 = vector.broadcast %cst_18 : f32 to vector<1x128xf32>
    %32 = arith.addf %31, %30 : vector<1x128xf32>
    %c0_19 = arith.constant 0 : index
    %33 = arith.index_cast %7 : i32 to index
    %34 = vector.load %arg8[%c0_19, %33] : memref<1x128xf32, #tpu.memory_space<vmem>>, vector<1x128xf32>
    tpu.vector_store %arg8[%c0_19, %33], %32 {strides = array<i32>} : memref<1x128xf32, #tpu.memory_space<vmem>>, vector<1x128xf32>,
    %c1_i32 = arith.constant 1 : i32
    return
  }
  func.func @transform_0(%arg0: i32) -> (i32, i32) {
    %c0_i32 = arith.constant 0 : i32
    %c0_i32_0 = arith.constant 0 : i32
    return %arg0, %c0_i32 : i32, i32
  }
  func.func @transform_1(%arg0: i32) -> (i32, i32) {
    %c0_i32 = arith.constant 0 : i32
    %c0_i32_0 = arith.constant 0 : i32
    %c0_i32_1 = arith.constant 0 : i32
    return %c0_i32, %c0_i32_0 : i32, i32
  }
  func.func @transform_2(%arg0: i32) -> (i32, i32) {
    %c0_i32 = arith.constant 0 : i32
    %c0_i32_0 = arith.constant 0 : i32
    %c0_i32_1 = arith.constant 0 : i32
    return %c0_i32, %c0_i32_0 : i32, i32
  }
  func.func @transform_3(%arg0: i32) -> (i32, i32) {
    %c0_i32 = arith.constant 0 : i32
    %c0_i32_0 = arith.constant 0 : i32
    %c0_i32_1 = arith.constant 0 : i32
    return %c0_i32, %c0_i32_0 : i32, i32
  }
  func.func @transform_4(%arg0: i32) -> (i32, i32) {
    %c0_i32 = arith.constant 0 : i32
    %c0_i32_0 = arith.constant 0 : i32
    %c0_i32_1 = arith.constant 0 : i32
    return %c0_i32, %c0_i32_0 : i32, i32
  }
  func.func @transform_5(%arg0: i32) -> (i32, i32) {
    %c0_i32 = arith.constant 0 : i32
    %c0_i32_0 = arith.constant 0 : i32
    %c0_i32_1 = arith.constant 0 : i32
    return %c0_i32, %c0_i32_0 : i32, i32
  }
  func.func @transform_6(%arg0: i32) -> (i32, i32) {
    %c0_i32 = arith.constant 0 : i32
    %c0_i32_0 = arith.constant 0 : i32
    %c0_i32_1 = arith.constant 0 : i32
    return %c0_i32, %c0_i32_0 : i32, i32
  }
  func.func @transform_7(%arg0: i32) -> (i32, i32) {
    %c0_i32 = arith.constant 0 : i32
    %c0_i32_0 = arith.constant 0 : i32
    return %c0_i32, %arg0 : i32, i32
  }
}

</mosaic_0001>

<llo_original>
// kernel: mlp_discriminator.1
$region0: #{mlp_discriminator.1}
  #allocation0 [shape = 'u32[]', space=smem, size = 0x4, offset = 0x4, fixed_abs, tag = 'smem constant byte address 0x4 - core index']
  #allocation1 [shape = 'u32[144,128]{1,0:T(1,128)}', space=vmem, size = 0x12000, scoped, tag = 'internal scratch']
  #allocation2 [shape = 'f32[1,1]{1,0:T(1,128)S(1)}', space=vmem, size = 0x200, scoped, tag = 'scoped memory for mlp_discriminator.1']
  %s0 = inlined_call_operand.vmem [shape: f32[8,32], index: 0, kind: input, shape index: {}]
  %s1 = inlined_call_operand.vmem [shape: f32[10,32], index: 1, kind: input, shape index: {}]
  %s2 = inlined_call_operand.vmem [shape: f32[10,1], index: 2, kind: input, shape index: {}]
  %s3 = inlined_call_operand.vmem [shape: f32[10,10], index: 3, kind: input, shape index: {}]
  %s4 = inlined_call_operand.vmem [shape: f32[10,1], index: 4, kind: input, shape index: {}]
  %s5 = inlined_call_operand.vmem [shape: f32[10,1], index: 5, kind: input, shape index: {}]
  %s6 = inlined_call_operand.<no memory space> [shape: f32[1,1], index: 6, kind: input, shape index: {}]
  %s7 = inlined_call_operand.vmem [shape: f32[1,128], index: 7, kind: output, shape index: {}]
  %s8 = sld [smem:[#allocation0]]
  $region38: #{mlp_discriminator.1} parent=0
    _
  %s10 = ssub.s32 1, %s8
  %s11 = scalar_select 0, %s10, %s8
  %v12 = vstv %s6
  %13 = vst [vmem:[#allocation2] sm:$0x1] %v12
  // Predicated region
  $region2: #{mlp_discriminator.1} parent=0 // pred_check
    _
  $region3: #{mlp_discriminator.1} parent=0 // pred_check_branch
    %15 = sbr.rel (0) target = $region5
  $region4: #{mlp_discriminator.1} parent=0 // pred_region
    _
  $region5: #{mlp_discriminator.1} parent=0 // pred_fallthru
    _
  // Predicated region
  $region6: #{mlp_discriminator.1} parent=0 // pred_check
    _
  $region7: #{mlp_discriminator.1} parent=0 // pred_check_branch
    %17 = sbr.rel (0) target = $region9
  $region8: #{mlp_discriminator.1} parent=0 // pred_region
    _
  $region9: #{mlp_discriminator.1} parent=0 // pred_fallthru
    _
  // Predicated region
  $region10: #{mlp_discriminator.1} parent=0 // pred_check
    _
  $region11: #{mlp_discriminator.1} parent=0 // pred_check_branch
    %19 = sbr.rel (0) target = $region13
  $region12: #{mlp_discriminator.1} parent=0 // pred_region
    _
  $region13: #{mlp_discriminator.1} parent=0 // pred_fallthru
    _
  // Predicated region
  $region14: #{mlp_discriminator.1} parent=0 // pred_check
    _
  $region15: #{mlp_discriminator.1} parent=0 // pred_check_branch
    %21 = sbr.rel (0) target = $region17
  $region16: #{mlp_discriminator.1} parent=0 // pred_region
    _
  $region17: #{mlp_discriminator.1} parent=0 // pred_fallthru
    _
  // Predicated region
  $region18: #{mlp_discriminator.1} parent=0 // pred_check
    _
  $region19: #{mlp_discriminator.1} parent=0 // pred_check_branch
    %23 = sbr.rel (0) target = $region21
  $region20: #{mlp_discriminator.1} parent=0 // pred_region
    _
  $region21: #{mlp_discriminator.1} parent=0 // pred_fallthru
    _
  // Predicated region
  $region22: #{mlp_discriminator.1} parent=0 // pred_check
    _
  $region23: #{mlp_discriminator.1} parent=0 // pred_check_branch
    %25 = sbr.rel (0) target = $region25
  $region24: #{mlp_discriminator.1} parent=0 // pred_region
    _
  $region25: #{mlp_discriminator.1} parent=0 // pred_fallthru
    _
  // Predicated region
  $region26: #{mlp_discriminator.1} parent=0 // pred_check
    _
  $region27: #{mlp_discriminator.1} parent=0 // pred_check_branch
    %27 = sbr.rel (0) target = $region29
  $region28: #{mlp_discriminator.1} parent=0 // pred_region
    _
  $region29: #{mlp_discriminator.1} parent=0 // pred_fallthru
    _
  %v28 = vld [vmem:[%s1] sm:$0xff]
  %v29 = vld [vmem:[%s1 + $0x8] sm:$0x3]
  %v30 = vld [vmem:[%s2] sm:$0xff]
  %v31 = vld [vmem:[%s2 + $0x8] sm:$0x3]
  %v32 = vld [vmem:[%s3] sm:$0xff]
  %v33 = vld [vmem:[%s3 + $0x8] sm:$0x3]
  %v34 = vld [vmem:[%s4] sm:$0xff]
  %v35 = vld [vmem:[%s4 + $0x8] sm:$0x3]
  %v36 = vld [vmem:[%s5] sm:$0xff]
  %v37 = vld [vmem:[%s5 + $0x8] sm:$0x3]
  %v38 = vld [vmem:[#allocation2] sm:$0x1]
  %v39 = vld [vmem:[%s0] sm:$0xff]
  %v40 = vld [vmem:[%s0 + $0x8] sm:$0xff]
  %v41 = vld [vmem:[%s0 + $0x10] sm:$0xff]
  %v42 = vld [vmem:[%s0 + $0x18] sm:$0xff]
  %v43 = vld [vmem:[%s0 + $0x20] sm:$0xff]
  %v44 = vld [vmem:[%s0 + $0x28] sm:$0xff]
  %v45 = vld [vmem:[%s0 + $0x30] sm:$0xff]
  %v46 = vld [vmem:[%s0 + $0x38] sm:$0xff]
  %v47 = vld [vmem:[%s0 + $0x40] sm:$0xff]
  %v48 = vld [vmem:[%s0 + $0x48] sm:$0xff]
  %v49 = vld [vmem:[%s0 + $0x50] sm:$0xff]
  %v50 = vld [vmem:[%s0 + $0x58] sm:$0xff]
  %v51 = vld [vmem:[%s0 + $0x60] sm:$0xff]
  %v52 = vld [vmem:[%s0 + $0x68] sm:$0xff]
  %v53 = vld [vmem:[%s0 + $0x70] sm:$0xff]
  %v54 = vld [vmem:[%s0 + $0x78] sm:$0xff]
  %56 = vset.pattern.permute.xlu0 0
  %57 = vperm.xlu0 %56, %v30
  %v58 = vpop.permute.xlu0 %57
  %61 = vset.pattern.permute.xlu0 0
  %62 = vperm.xlu0 %61, %v31
  %v63 = vpop.permute.xlu0 %62
  %vm65 = vcmask 261120
  %v67 = vsel %vm65, %v28, 0
  %v70 = vsel %vm65, %v29, 0
  %v73 = vsel %vm65, %v39, 0
  %v76 = vsel %vm65, %v40, 0
  %v79 = vsel %vm65, %v41, 0
  %v82 = vsel %vm65, %v42, 0
  %v85 = vsel %vm65, %v43, 0
  %v88 = vsel %vm65, %v44, 0
  %v91 = vsel %vm65, %v45, 0
  %v94 = vsel %vm65, %v46, 0
  %v97 = vsel %vm65, %v47, 0
  %v100 = vsel %vm65, %v48, 0
  %v103 = vsel %vm65, %v49, 0
  %v106 = vsel %vm65, %v50, 0
  %v109 = vsel %vm65, %v51, 0
  %v112 = vsel %vm65, %v52, 0
  %v115 = vsel %vm65, %v53, 0
  %v118 = vsel %vm65, %v54, 0
  %120 = vmatprep.subr.mxu0 0.0
  %121 = vmatpush1.xpose.msra.mxu0 %v73
  %122 = vmatprep.subr.mxu0 0.0
  %123 = vmatpush1.xpose.msra.mxu0 %v76
  %124 = vmatprep.subr.mxu0 0.0
  %125 = vmatpush1.xpose.msra.mxu0 %v79
  %126 = vmatprep.subr.mxu0 0.0
  %127 = vmatpush1.xpose.msra.mxu0 %v82
  %128 = vmatprep.subr.mxu0 0.0
  %129 = vmatpush1.xpose.msra.mxu0 %v85
  %130 = vmatprep.subr.mxu0 0.0
  %131 = vmatpush1.xpose.msra.mxu0 %v88
  %132 = vmatprep.subr.mxu0 0.0
  %133 = vmatpush1.xpose.msra.mxu0 %v91
  %134 = vmatprep.subr.mxu0 0.0
  %135 = vmatpush1.xpose.msra.mxu0 %v94
  %136 = vmatprep.subr.mxu0 0.0
  %137 = vmatpush1.xpose.msra.mxu0 %v97
  %138 = vmatprep.subr.mxu0 0.0
  %139 = vmatpush1.xpose.msra.mxu0 %v100
  %140 = vmatprep.subr.mxu0 0.0
  %141 = vmatpush1.xpose.msra.mxu0 %v103
  %142 = vmatprep.subr.mxu0 0.0
  %143 = vmatpush1.xpose.msra.mxu0 %v106
  %144 = vmatprep.subr.mxu0 0.0
  %145 = vmatpush1.xpose.msra.mxu0 %v109
  %146 = vmatprep.subr.mxu0 0.0
  %147 = vmatpush1.xpose.msra.mxu0 %v112
  %148 = vmatprep.subr.mxu0 0.0
  %149 = vmatpush1.xpose.msra.mxu0 %v115
  %150 = vmatprep.subr.mxu0 0.0
  %151 = vmatpush1.xpose.msra.mxu0 %v118
  %152 = vmatprep.subr.mxu0 0.0
  %153 = vmatpush1.xpose.msra.mxu0 0.0
  %154 = vmatprep.subr.mxu0 0.0
  %155 = vmatpush1.xpose.msra.mxu0 0.0
  %156 = vmatprep.subr.mxu0 0.0
  %157 = vmatpush1.xpose.msra.mxu0 0.0
  %158 = vmatprep.subr.mxu0 0.0
  %159 = vmatpush1.xpose.msra.mxu0 0.0
  %160 = vmatprep.subr.mxu0 0.0
  %161 = vmatpush1.xpose.msra.mxu0 0.0
  %162 = vmatprep.subr.mxu0 0.0
  %163 = vmatpush1.xpose.msra.mxu0 0.0
  %164 = vmatprep.subr.mxu0 0.0
  %165 = vmatpush1.xpose.msra.mxu0 0.0
  %166 = vmatprep.subr.mxu0 0.0
  %167 = vmatpush1.xpose.msra.mxu0 0.0
  %168 = vmatprep.subr.mxu0 0.0
  %169 = vmatpush1.xpose.msra.mxu0 0.0
  %170 = vmatprep.subr.mxu0 0.0
  %171 = vmatpush1.xpose.msra.mxu0 0.0
  %172 = vmatprep.subr.mxu0 0.0
  %173 = vmatpush1.xpose.msra.mxu0 0.0
  %174 = vmatprep.subr.mxu0 0.0
  %175 = vmatpush1.xpose.msra.mxu0 0.0
  %176 = vmatprep.subr.mxu0 0.0
  %177 = vmatpush1.xpose.msra.mxu0 0.0
  %178 = vmatprep.subr.mxu0 0.0
  %179 = vmatpush1.xpose.msra.mxu0 0.0
  %180 = vmatprep.subr.mxu0 0.0
  %181 = vmatpush1.xpose.msra.mxu0 0.0
  %182 = vmatprep.subr.mxu0 0.0
  %183 = vmatpush1.xpose.msra.mxu0 0.0
  %184 = vmatprep.mubr.f32.mxu0 0.0
  %185 = vmatmul.mubr.f32.gmra.mrb[0].mxu0 %v67
  %v186 = vpop.f32.mrb[0].mxu0
  %v187 = vadd.f32 %v58, %v186
  %v188 = vpop.f32.mrb[0].mxu0
  %189 = vmatprep.mubr.f32.mxu0 0.0
  %190 = vmatmul.mubr.f32.gmra.mrb[0].mxu0 %v70
  %v191 = vpop.f32.mrb[0].mxu0
  %v192 = vadd.f32 %v63, %v191
  %v193 = vpop.f32.mrb[0].mxu0
  %194 = vdwg.mxu0
  %v195 = vmax.f32 %v187, 0.0
  %v196 = vmax.f32 %v192, 0.0
  %198 = vset.pattern.permute.xlu0 0
  %199 = vperm.xlu0 %198, %v34
  %v200 = vpop.permute.xlu0 %199
  %203 = vset.pattern.permute.xlu0 0
  %204 = vperm.xlu0 %203, %v35
  %v205 = vpop.permute.xlu0 %204
  %vm207 = vcmask 80896
  %v209 = vsel %vm207, %v32, 0
  %v212 = vsel %vm207, %v33, 0
  %vm214 = vcmask 1041408
  %v216 = vsel %vm214, %v196, 0
  %218 = vmatprep.subr.mxu0 0.0
  %219 = vmatpush1.msra.mxu0 %v195
  %220 = vmatprep.subr.mxu0 0.0
  %221 = vmatpush1.msra.mxu0 %v216
  %222 = vmatprep.subr.mxu0 0.0
  %223 = vmatpush1.msra.mxu0 0.0
  %224 = vmatprep.subr.mxu0 0.0
  %225 = vmatpush1.msra.mxu0 0.0
  %226 = vmatprep.subr.mxu0 0.0
  %227 = vmatpush1.msra.mxu0 0.0
  %228 = vmatprep.subr.mxu0 0.0
  %229 = vmatpush1.msra.mxu0 0.0
  %230 = vmatprep.subr.mxu0 0.0
  %231 = vmatpush1.msra.mxu0 0.0
  %232 = vmatprep.subr.mxu0 0.0
  %233 = vmatpush1.msra.mxu0 0.0
  %234 = vmatprep.subr.mxu0 0.0
  %235 = vmatpush1.msra.mxu0 0.0
  %236 = vmatprep.subr.mxu0 0.0
  %237 = vmatpush1.msra.mxu0 0.0
  %238 = vmatprep.subr.mxu0 0.0
  %239 = vmatpush1.msra.mxu0 0.0
  %240 = vmatprep.subr.mxu0 0.0
  %241 = vmatpush1.msra.mxu0 0.0
  %242 = vmatprep.subr.mxu0 0.0
  %243 = vmatpush1.msra.mxu0 0.0
  %244 = vmatprep.subr.mxu0 0.0
  %245 = vmatpush1.msra.mxu0 0.0
  %246 = vmatprep.subr.mxu0 0.0
  %247 = vmatpush1.msra.mxu0 0.0
  %248 = vmatprep.subr.mxu0 0.0
  %249 = vmatpush1.msra.mxu0 0.0
  %250 = vmatprep.subr.mxu0 0.0
  %251 = vmatpush1.msra.mxu0 0.0
  %252 = vmatprep.subr.mxu0 0.0
  %253 = vmatpush1.msra.mxu0 0.0
  %254 = vmatprep.subr.mxu0 0.0
  %255 = vmatpush1.msra.mxu0 0.0
  %256 = vmatprep.subr.mxu0 0.0
  %257 = vmatpush1.msra.mxu0 0.0
  %258 = vmatprep.subr.mxu0 0.0
  %259 = vmatpush1.msra.mxu0 0.0
  %260 = vmatprep.subr.mxu0 0.0
  %261 = vmatpush1.msra.mxu0 0.0
  %262 = vmatprep.subr.mxu0 0.0
  %263 = vmatpush1.msra.mxu0 0.0
  %264 = vmatprep.subr.mxu0 0.0
  %265 = vmatpush1.msra.mxu0 0.0
  %266 = vmatprep.subr.mxu0 0.0
  %267 = vmatpush1.msra.mxu0 0.0
  %268 = vmatprep.subr.mxu0 0.0
  %269 = vmatpush1.msra.mxu0 0.0
  %270 = vmatprep.subr.mxu0 0.0
  %271 = vmatpush1.msra.mxu0 0.0
  %272 = vmatprep.subr.mxu0 0.0
  %273 = vmatpush1.msra.mxu0 0.0
  %274 = vmatprep.subr.mxu0 0.0
  %275 = vmatpush1.msra.mxu0 0.0
  %276 = vmatprep.subr.mxu0 0.0
  %277 = vmatpush1.msra.mxu0 0.0
  %278 = vmatprep.subr.mxu0 0.0
  %279 = vmatpush1.msra.mxu0 0.0
  %280 = vmatprep.subr.mxu0 0.0
  %281 = vmatpush1.msra.mxu0 0.0
  %282 = vmatprep.mubr.f32.mxu0 0.0
  %283 = vmatmul.mubr.f32.gmra.mrb[0].mxu0 %v209
  %v284 = vpop.f32.mrb[0].mxu0
  %v285 = vadd.f32 %v200, %v284
  %v286 = vpop.f32.mrb[0].mxu0
  %287 = vmatprep.mubr.f32.mxu0 0.0
  %288 = vmatmul.mubr.f32.gmra.mrb[0].mxu0 %v212
  %v289 = vpop.f32.mrb[0].mxu0
  %v290 = vadd.f32 %v205, %v289
  %v291 = vpop.f32.mrb[0].mxu0
  %292 = vdwg.mxu0
  %v293 = vmax.f32 %v285, 0.0
  %v294 = vmax.f32 %v290, 0.0
  %296 = vset.pattern.permute.xlu0 0
  %297 = vperm.xlu0 %296, %v36
  %v298 = vpop.permute.xlu0 %297
  %301 = vset.pattern.permute.xlu0 0
  %302 = vperm.xlu0 %301, %v37
  %v303 = vpop.permute.xlu0 %302
  %v305 = vmul.f32 %v293, %v298
  %v306 = vmul.f32 %v294, %v303
  %v307 = vsel %vm214, %v306, 0.0
  %v308 = vadd.f32 %v305, %v307
  %v309 = vrot.slane %v308, 4
  %v310 = vadd.f32 %v308, %v309
  %v311 = vrot.slane %v310, 2
  %v312 = vadd.f32 %v310, %v311
  %v313 = vrot.slane %v312, 1
  %v314 = vadd.f32 %v312, %v313
  %316 = vset.pattern.permute.xlu0 0
  %317 = vperm.xlu0 %316, %v38
  %v318 = vpop.permute.xlu0 %317
  %v320 = vlaneseq
  %v321 = vshrl.u32 %v320, 7
  %v322 = vsub.s32 0, %v321
  %v323 = vrot.slane %v318, %v322
  %v324 = vadd.f32 %v314, %v323
  %v325 = vmul.f32 %v324, 0.5
  %v326 = vtanh.pop %v325
  %v327 = vmul.f32 %v326, 0.5
  %v328 = vadd.f32 %v327, 0.5
  %329 = vst [vmem:[%s7] sm:$0x1] %v328
  // Predicated region
  $region30: #{mlp_discriminator.1} parent=0 // pred_check
    _
  $region31: #{mlp_discriminator.1} parent=0 // pred_check_branch
    %331 = sbr.rel (0) target = $region33
  $region32: #{mlp_discriminator.1} parent=0 // pred_region
    _
  $region33: #{mlp_discriminator.1} parent=0 // pred_fallthru
    _
  // Predicated region
  $region34: #{mlp_discriminator.1} parent=0 // pred_check
    _
  $region35: #{mlp_discriminator.1} parent=0 // pred_check_branch
    %333 = sbr.rel (0) target = $region37
  $region36: #{mlp_discriminator.1} parent=0 // pred_region
    _
  $region37: #{mlp_discriminator.1} parent=0 // pred_fallthru
    _

</llo_original>
